<compile_context>
chip_gen: v7x
topology: tpu7x:2x2x1
jax: 0.10.0
libtpu: 0.0.40
codegen_flags: <defaults>
</compile_context>

<pallas_src>
import functools

import jax
import jax.numpy as jnp
import numpy as np
from jax.experimental import pallas as pl
from jax.experimental.pallas import tpu as pltpu

KD = KH = KW = 3
EPS = 1e-5          # InstanceNorm3d default eps
NEG_SLOPE = 0.01    # LeakyReLU default negative_slope


def _conv_in_lrelu_kernel(p_ref, w_ref, o_ref, acc_ref):
    """One (sample, channel-group) per grid step.

    p_ref  : (K, DHW)       im2col patches for one sample (K = 27 * Cin)
    w_ref  : (Ct, K)        conv weights for this channel group
    o_ref  : (Ct, DHW)      conv + InstanceNorm + LeakyReLU output (NCDHW order)
    acc_ref: (Ct, DHW) f32  VMEM accumulator scratch
    """
    # Conv3d as a single fat matmul; f32 accumulation on the MXU.
    acc_ref[...] = jnp.dot(w_ref[...], p_ref[...],
                           preferred_element_type=jnp.float32)
    acc = acc_ref[...]

    # InstanceNorm3d (affine=False, biased variance): per-channel stats over
    # the spatial (lane) axis, single fused sweep (centered is reused).
    mean = jnp.mean(acc, axis=1, keepdims=True)            # (Ct, 1)
    centered = acc - mean
    var = jnp.mean(centered * centered, axis=1, keepdims=True)
    y = centered * jax.lax.rsqrt(var + EPS)

    # LeakyReLU
    o_ref[...] = jnp.where(y >= 0, y, NEG_SLOPE * y).astype(o_ref.dtype)


@functools.partial(jax.jit, static_argnames=("compute_dtype",))
def conv3d_bn_relu(x_ncdhw, w_kkkio, bias=None, *, compute_dtype=jnp.float32):
    """Forward pass of Conv3dBnReLU (norm_type='IN', relu=True).

    x_ncdhw: (N, Cin, D, H, W) float32 (PyTorch NCDHW convention)
    w_kkkio: (3, 3, 3, Cin, Cout) float32 conv weights
    bias:    (Cout,) -- accepted for API parity but NOT applied: InstanceNorm
             subtracts the per-channel mean right after the conv, so a
             per-channel constant cancels exactly.
    compute_dtype: dtype fed to the MXU (bf16 on v6e/v7x halves DMA bytes and
             doubles MXU throughput once Cin/Cout are large; f32 default).
    returns: (N, Cout, D, H, W) float32
    """
    del bias  # mathematically cancelled by InstanceNorm (see docstring)

    N, Cin, D, H, W = x_ncdhw.shape
    assert w_kkkio.shape[:4] == (KD, KH, KW, Cin)
    Cout = w_kkkio.shape[-1]
    DHW = D * H * W
    K = KD * KH * KW * Cin                     # 27 * Cin

    # --- im2col with channel-major K ordering (k = ci*27 + tap). Built
    # straight from NCDHW (no input transpose); under jit the pad + 27 slices
    # + stack fuse into a single gather/copy pass.
    xp = jnp.pad(x_ncdhw, ((0, 0), (0, 0), (1, 1), (1, 1), (1, 1)))
    taps = [xp[:, :, kd:kd + D, kh:kh + H, kw:kw + W]
            for kd in range(KD) for kh in range(KH) for kw in range(KW)]
    patches = jnp.stack(taps, axis=2)          # (N, Cin, 27, D, H, W)
    patches = patches.reshape(N, K, DHW).astype(compute_dtype)

    # Weights -> (Cout, K) with matching K ordering (ci outer, tap inner).
    w2 = jnp.transpose(w_kkkio, (4, 3, 0, 1, 2)).reshape(Cout, K)
    w2 = w2.astype(compute_dtype)

    # Channel-group tiling: extra "parallel" grid axis (keeps both v7x
    # TensorCores busy at small N) and bounds the per-step output block.
    c_tile = Cout
    for cand in (256, 128):
        if Cout > cand and Cout % cand == 0:
            c_tile = cand
            break
    n_cgrp = Cout // c_tile

    in_bytes = np.dtype(compute_dtype).itemsize
    block_bytes = (K * DHW * in_bytes          # patches block
                   + c_tile * K * in_bytes     # weight block
                   + c_tile * DHW * 4)         # output block (f32)
    vmem_limit = int(min(max(2 * block_bytes + c_tile * DHW * 4 + (2 << 20),
                             16 << 20),
                         64 << 20))

    cost = pl.CostEstimate(
        flops=2 * N * Cout * K * DHW + 6 * N * Cout * DHW,
        transcendentals=N * Cout,
        bytes_accessed=(N * K * DHW * in_bytes + Cout * K * in_bytes
                        + N * Cout * DHW * 4),
    )

    out = pl.pallas_call(
        _conv_in_lrelu_kernel,
        out_shape=jax.ShapeDtypeStruct((N, Cout, DHW), jnp.float32),
        grid=(N, n_cgrp),
        in_specs=[
            # Patches block index is constant across the (inner) channel-group
            # axis, so Pallas keeps it resident instead of re-fetching it.
            pl.BlockSpec((None, K, DHW), lambda n, c: (n, 0, 0)),
            pl.BlockSpec((c_tile, K), lambda n, c: (c, 0)),
        ],
        out_specs=pl.BlockSpec((None, c_tile, DHW), lambda n, c: (n, c, 0)),
        scratch_shapes=[pltpu.VMEM((c_tile, DHW), jnp.float32)],
        compiler_params=pltpu.CompilerParams(
            dimension_semantics=("parallel", "parallel"),
            vmem_limit_bytes=vmem_limit),
        cost_estimate=cost,
    )(patches, w2)

    # (N, Cout, DHW) is already NCDHW-ordered: reshape only, no transpose.
    return out.reshape(N, Cout, D, H, W)


def reference(x_ncdhw, w_kkkio, bias):
    """Pure-JAX reference matching the PyTorch module semantics (with bias)."""
    w_oidhw = jnp.transpose(w_kkkio, (4, 3, 0, 1, 2))
    out = jax.lax.conv_general_dilated(
        x_ncdhw, w_oidhw, window_strides=(1, 1, 1),
        padding=((1, 1), (1, 1), (1, 1)),
        dimension_numbers=("NCDHW", "OIDHW", "NCDHW"))
    out = out + bias[None, :, None, None, None]
    mean = jnp.mean(out, axis=(2, 3, 4), keepdims=True)
    var = jnp.mean((out - mean) ** 2, axis=(2, 3, 4), keepdims=True)
    out = (out - mean) / jnp.sqrt(var + EPS)
    return jnp.where(out >= 0, out, NEG_SLOPE * out)


if __name__ == "__main__":
    key = jax.random.PRNGKey(0)
    k1, k2, k3 = jax.random.split(key, 3)

    # Small shapes consistent with Conv3dBnReLU (5-D NCDHW input).
    N, Cin, Cout, D, H, W = 2, 4, 8, 8, 8, 8
    x = jax.random.normal(k1, (N, Cin, D, H, W), dtype=jnp.float32)
    w = jax.random.normal(k2, (KD, KH, KW, Cin, Cout), dtype=jnp.float32) * 0.1
    b = jax.random.normal(k3, (Cout,), dtype=jnp.float32) * 0.1

    y_ref = reference(x, w, b)

    # f32 MXU path: tight tolerance (bias is dropped in-kernel but the
    # reference applies it -- InstanceNorm cancels it, proving the identity).
    y = conv3d_bn_relu(x, w, b)
    jax.block_until_ready(y)
    np.testing.assert_allclose(np.asarray(y), np.asarray(y_ref),
                               rtol=1e-3, atol=1e-3)

    # bf16 MXU path (v6e/v7x option): looser tolerance smoke check.
    y_bf16 = conv3d_bn_relu(x, w, b, compute_dtype=jnp.bfloat16)
    jax.block_until_ready(y_bf16)
    np.testing.assert_allclose(np.asarray(y_bf16), np.asarray(y_ref),
                               rtol=5e-2, atol=5e-2)

    print("KERNEL_OK")
</pallas_src>

<mosaic_0001>
module attributes {stable_mosaic.version = 11 : i64} {
  func.func @_conv_in_lrelu_kernel(%arg0: i32, %arg1: i32, %arg2: memref<1x108x512xf32, #tpu.memory_space<vmem>>, %arg3: memref<8x108xf32, #tpu.memory_space<vmem>>, %arg4: memref<1x8x512xf32, #tpu.memory_space<vmem>>, %arg5: memref<8x512xf32, #tpu.memory_space<vmem>>) attributes {dimension_semantics = [#tpu.dimension_semantics<parallel>, #tpu.dimension_semantics<parallel>], iteration_bounds = array<i64: 2, 1>, scalar_prefetch = 0 : i64, scratch_operands = 1 : i64, tpu.core_type = #tpu.core_type<tc>, window_params = [{transform_indices = @transform_0, window_bounds = array<i64: 1, 108, 512>}, {transform_indices = @transform_1, window_bounds = array<i64: 8, 108>}, {transform_indices = @transform_2, window_bounds = array<i64: 1, 8, 512>}]} {
    %c0 = arith.constant 0 : index
    %c0_0 = arith.constant 0 : index
    %0 = vector.load %arg3[%c0, %c0_0] : memref<8x108xf32, #tpu.memory_space<vmem>>, vector<8x108xf32>
    %c0_1 = arith.constant 0 : index
    %c0_2 = arith.constant 0 : index
    %c0_3 = arith.constant 0 : index
    %1 = vector.load %arg2[%c0_1, %c0_2, %c0_3] : memref<1x108x512xf32, #tpu.memory_space<vmem>>, vector<1x108x512xf32>
    %2 = vector.shape_cast %1 : vector<1x108x512xf32> to vector<108x512xf32>
    %cst = arith.constant dense<0.000000e+00> : vector<8x512xf32>
    %3 = tpu.matmul %0, %2, %cst {dimension_numbers = #tpu.dot_dimension_numbers<[1], [0], [0], [1], [0, 0, 1, 1], [], []>} : vector<8x108xf32>, vector<108x512xf32>, vector<8x512xf32> -> vector<8x512xf32>
    %c0_4 = arith.constant 0 : index
    %c0_5 = arith.constant 0 : index
    %4 = vector.load %arg5[%c0_4, %c0_5] : memref<8x512xf32, #tpu.memory_space<vmem>>, vector<8x512xf32>
    tpu.vector_store %arg5[%c0_4, %c0_5], %3 {strides = array<i32>} : memref<8x512xf32, #tpu.memory_space<vmem>>, vector<8x512xf32>,
    %c0_6 = arith.constant 0 : index
    %c0_7 = arith.constant 0 : index
    %5 = vector.load %arg5[%c0_6, %c0_7] : memref<8x512xf32, #tpu.memory_space<vmem>>, vector<8x512xf32>
    %cst_8 = arith.constant dense<0.000000e+00> : vector<8xf32>
    %6 = vector.multi_reduction <add>, %5, %cst_8 [1] : vector<8x512xf32> to vector<8xf32>
    %7 = vector.shape_cast %6 : vector<8xf32> to vector<8x1xf32>
    %cst_9 = arith.constant 5.120000e+02 : f32
    %8 = vector.broadcast %cst_9 : f32 to vector<8x1xf32>
    %9 = arith.divf %7, %8 : vector<8x1xf32>
    %10 = vector.broadcast %9 : vector<8x1xf32> to vector<8x512xf32>
    %11 = arith.subf %5, %10 : vector<8x512xf32>
    %12 = arith.mulf %11, %11 : vector<8x512xf32>
    %cst_10 = arith.constant dense<0.000000e+00> : vector<8xf32>
    %13 = vector.multi_reduction <add>, %12, %cst_10 [1] : vector<8x512xf32> to vector<8xf32>
    %14 = vector.shape_cast %13 : vector<8xf32> to vector<8x1xf32>
    %cst_11 = arith.constant 5.120000e+02 : f32
    %15 = vector.broadcast %cst_11 : f32 to vector<8x1xf32>
    %16 = arith.divf %14, %15 : vector<8x1xf32>
    %cst_12 = arith.constant 9.99999974E-6 : f32
    %17 = vector.broadcast %cst_12 : f32 to vector<8x1xf32>
    %18 = arith.addf %16, %17 : vector<8x1xf32>
    %19 = math.rsqrt %18 : vector<8x1xf32>
    %20 = vector.broadcast %19 : vector<8x1xf32> to vector<8x512xf32>
    %21 = arith.mulf %11, %20 : vector<8x512xf32>
    %cst_13 = arith.constant 0.000000e+00 : f32
    %22 = vector.broadcast %cst_13 : f32 to vector<8x512xf32>
    %23 = arith.cmpf oge, %21, %22 : vector<8x512xf32>
    %cst_14 = arith.constant 0.00999999977 : f32
    %24 = vector.broadcast %cst_14 : f32 to vector<8x512xf32>
    %25 = arith.mulf %24, %21 : vector<8x512xf32>
    %26 = arith.select %23, %21, %25 : vector<8x512xi1>, vector<8x512xf32>
    %c0_15 = arith.constant 0 : index
    %c0_16 = arith.constant 0 : index
    %c0_17 = arith.constant 0 : index
    %27 = vector.load %arg4[%c0_15, %c0_16, %c0_17] : memref<1x8x512xf32, #tpu.memory_space<vmem>>, vector<1x8x512xf32>
    %28 = vector.shape_cast %27 : vector<1x8x512xf32> to vector<8x512xf32>
    %29 = vector.shape_cast %26 : vector<8x512xf32> to vector<1x8x512xf32>
    tpu.vector_store %arg4[%c0_15, %c0_16, %c0_17], %29 {strides = array<i32>} : memref<1x8x512xf32, #tpu.memory_space<vmem>>, vector<1x8x512xf32>,
    return
  }
  func.func @transform_0(%arg0: i32, %arg1: i32) -> (i32, i32, i32) {
    %c0_i32 = arith.constant 0 : i32
    %c0_i32_0 = arith.constant 0 : i32
    %c0_i32_1 = arith.constant 0 : i32
    return %arg0, %c0_i32, %c0_i32_0 : i32, i32, i32
  }
  func.func @transform_1(%arg0: i32, %arg1: i32) -> (i32, i32) {
    %c0_i32 = arith.constant 0 : i32
    %c0_i32_0 = arith.constant 0 : i32
    return %arg1, %c0_i32 : i32, i32
  }
  func.func @transform_2(%arg0: i32, %arg1: i32) -> (i32, i32, i32) {
    %c0_i32 = arith.constant 0 : i32
    %c0_i32_0 = arith.constant 0 : i32
    return %arg0, %arg1, %c0_i32 : i32, i32, i32
  }
}

</mosaic_0001>

<llo_original>
// kernel: conv3d_bn_relu.1
$region0: #{conv3d_bn_relu.1}
  #allocation0 [shape = 'u32[]', space=smem, size = 0x4, offset = 0x4, fixed_abs, tag = 'smem constant byte address 0x4 - core index']
  #allocation1 [shape = 'u32[144,128]{1,0:T(1,128)}', space=vmem, size = 0x12000, scoped, tag = 'internal scratch']
  #allocation2 [shape = 'f32[8,512]{1,0:T(8,128)}', space=vmem, size = 0x4000, scoped, tag = 'scratch operand']
  %s0 = inlined_call_operand.vmem [shape: f32[2,108,512], index: 0, kind: input, shape index: {}]
  %s1 = inlined_call_operand.vmem [shape: f32[8,108], index: 1, kind: input, shape index: {}]
  %s2 = inlined_call_operand.vmem [shape: f32[2,8,512], index: 2, kind: output, shape index: {}]
  %s3 = sld [smem:[#allocation0]]
  $region41: #{conv3d_bn_relu.1} parent=0
    _
  %s5 = ssub.s32 1, %s3
  %s6 = scalar_select 0, %s5, %s3
  loop: start=0, step=1, limit=4
  $region2: #{conv3d_bn_relu.1} parent=0 // loop_pre_header
    _
  $region3: #{conv3d_bn_relu.1} parent=0 // loop_header
    %s8 = sphi 0, %s12
    %p9 = scmp.ge.s32.totalorder %s8, 4
    %s15 = sphi 0, %s27
    %s16 = sphi 0, %s23
    %s17 = sphi 0, %s15
    %s18 = sphi 0, %s16
    %s19 = sphi 0, %s17
    %s20 = sphi 0, %s18
    %s30 = sphi 0, %s32
    %s33 = sphi 0, %s30
    %s34 = sphi 0, %s33
    %s50 = sphi 0, %s34
    %s56 = sphi 0, %s58
    %s59 = sphi 0, %s56
    %s60 = sphi 0, %s59
    %s76 = sphi 0, %s60
    %s84 = sphi 0, %s86
    %s87 = sphi 0, %s84
    %s88 = sphi 0, %s87
    %s104 = sphi 0, %s88
  $region4: #{conv3d_bn_relu.1} parent=0 // loop_header_branch
    %11 = sbr.rel (%p9) target = $region8
  $region5: #{conv3d_bn_relu.1} parent=0 // loop_body
    %s13 = ssub.s32 %s8, 1
    %s14 = ssub.s32 %s8, 2
    %s21 = sadd.s32 1, %s16
    %p22 = scmp.ge.s32.totalorder %s21, 1
    %s23 = scalar_select %p22, 0, %s21
    %s24 = sadd.s32 1, %s15
    %s25 = scalar_select %p22, %s24, %s15
    %p26 = scmp.ge.s32.totalorder %s25, 2
    %s27 = scalar_select %p26, 0, %s25
    %s28 = ssub.s32 %s15, %s27
    %p29 = scmp.eq.s32.totalorder %s28, 0
    %s31 = sadd.s32 %s30, 1
    %s32 = scalar_select %p29, %s30, %s31
    %p35 = pneg %p29
    %p36 = scmp.eq.s32.totalorder %s8, 1
    %p37 = por %p35, %p36
    %p38 = scmp.ne.s32.totalorder %s30, %s33
    %p39 = scmp.eq.s32.totalorder %s8, 0
    %p40 = por %p38, %p39
    %p41 = scmp.ne.s32.totalorder %s30, %s33
    %p42 = scmp.eq.s32.totalorder %s13, 1
    %p43 = por %p41, %p42
    %p44 = scmp.ne.s32.totalorder %s33, %s34
    %p45 = scmp.eq.s32.totalorder %s13, 0
    %p46 = por %p44, %p45
    %p47 = scmp.ne.s32.totalorder %s33, %s34
    %p48 = scmp.eq.s32.totalorder %s14, 1
    %p49 = por %p47, %p48
    %p51 = scmp.ne.s32.totalorder %s34, %s50
    %p52 = scmp.eq.s32.totalorder %s14, 0
    %p53 = por %p51, %p52
    %s54 = ssub.s32 %s16, %s23
    %p55 = scmp.eq.s32.totalorder %s54, 0
    %s57 = sadd.s32 %s56, 1
    %s58 = scalar_select %p55, %s56, %s57
    %p61 = pneg %p55
    %p62 = scmp.eq.s32.totalorder %s8, 1
    %p63 = por %p61, %p62
    %p64 = scmp.ne.s32.totalorder %s56, %s59
    %p65 = scmp.eq.s32.totalorder %s8, 0
    %p66 = por %p64, %p65
    %p67 = scmp.ne.s32.totalorder %s56, %s59
    %p68 = scmp.eq.s32.totalorder %s13, 1
    %p69 = por %p67, %p68
    %p70 = scmp.ne.s32.totalorder %s59, %s60
    %p71 = scmp.eq.s32.totalorder %s13, 0
    %p72 = por %p70, %p71
    %p73 = scmp.ne.s32.totalorder %s59, %s60
    %p74 = scmp.eq.s32.totalorder %s14, 1
    %p75 = por %p73, %p74
    %p77 = scmp.ne.s32.totalorder %s60, %s76
    %p78 = scmp.eq.s32.totalorder %s14, 0
    %p79 = por %p77, %p78
    %s80 = ssub.s32 %s15, %s27
    %s81 = ssub.s32 %s16, %s23
    %s82 = sor.u32 %s80, %s81
    %p83 = scmp.eq.s32.totalorder %s82, 0
    %s85 = sadd.s32 %s84, 1
    %s86 = scalar_select %p83, %s84, %s85
    %p89 = pneg %p83
    %p90 = scmp.eq.s32.totalorder %s8, 1
    %p91 = por %p89, %p90
    %p92 = scmp.ne.s32.totalorder %s84, %s87
    %p93 = scmp.eq.s32.totalorder %s8, 0
    %p94 = por %p92, %p93
    %p95 = scmp.ne.s32.totalorder %s84, %s87
    %p96 = scmp.eq.s32.totalorder %s13, 1
    %p97 = por %p95, %p96
    %p98 = scmp.ne.s32.totalorder %s87, %s88
    %p99 = scmp.eq.s32.totalorder %s13, 0
    %p100 = por %p98, %p99
    %p101 = scmp.ne.s32.totalorder %s87, %s88
    %p102 = scmp.eq.s32.totalorder %s14, 1
    %p103 = por %p101, %p102
    %p105 = scmp.ne.s32.totalorder %s88, %s104
    %p106 = scmp.eq.s32.totalorder %s14, 0
    %p107 = por %p105, %p106
    %p108 = scmp.le.s32.totalorder 1, %s8
    %p109 = scmp.lt.s32.totalorder %s8, 3
    %p110 = pnand %p108, %p109
    %p111 = pneg %p110
    // Predicated region
    $region9: #{conv3d_bn_relu.1} parent=5 // pred_check
      _
    $region10: #{conv3d_bn_relu.1} parent=5 // pred_check_branch
      %113 = sbr.rel (%p110) target = $region12
    $region11: #{conv3d_bn_relu.1} parent=5 // pred_region
      %s114 = ssub.s32 %s8, 1
      // Predicated region
      $region13: #{conv3d_bn_relu.1} parent=11 // pred_check
        %p115 = pneg %p72
      $region14: #{conv3d_bn_relu.1} parent=11 // pred_check_branch
        %117 = sbr.rel (%p115) target = $region16
      $region15: #{conv3d_bn_relu.1} parent=11 // pred_region
        %p118 = scmp.lt.s32.totalorder %s18, 0
        %s119 = scalar_select %p118, %s18, 0
        %s120 = smul.addr %s119, 8
        %s121 = scalar_lea.vmem %s1, %s120
      $region16: #{conv3d_bn_relu.1} parent=11 // pred_fallthru
        _
    $region12: #{conv3d_bn_relu.1} parent=5 // pred_fallthru
      _
    %p122 = scmp.lt.s32.totalorder %s8, 2
    // Predicated region
    $region17: #{conv3d_bn_relu.1} parent=5 // pred_check
      %p123 = pneg %p122
    $region18: #{conv3d_bn_relu.1} parent=5 // pred_check_branch
      %125 = sbr.rel (%p123) target = $region20
    $region19: #{conv3d_bn_relu.1} parent=5 // pred_region
      // Predicated region
      $region21: #{conv3d_bn_relu.1} parent=19 // pred_check
        %p126 = pneg %p40
      $region22: #{conv3d_bn_relu.1} parent=19 // pred_check_branch
        %128 = sbr.rel (%p126) target = $region24
      $region23: #{conv3d_bn_relu.1} parent=19 // pred_region
        %p129 = scmp.lt.s32.totalorder %s15, 1
        %s130 = scalar_select %p129, %s15, 1
        %s131 = smul.addr %s130, 56
        %s132 = smul.addr %s131, 8
        %s133 = scalar_lea.vmem %s0, %s132
      $region24: #{conv3d_bn_relu.1} parent=19 // pred_fallthru
        _
    $region20: #{conv3d_bn_relu.1} parent=5 // pred_fallthru
      _
    %p134 = scmp.le.s32.totalorder 1, %s8
    %p135 = scmp.lt.s32.totalorder %s8, 3
    %p136 = pnand %p134, %p135
    %p137 = pneg %p136
    // Predicated region
    $region25: #{conv3d_bn_relu.1} parent=5 // pred_check
      _
    $region26: #{conv3d_bn_relu.1} parent=5 // pred_check_branch
      %139 = sbr.rel (%p136) target = $region28
    $region27: #{conv3d_bn_relu.1} parent=5 // pred_region
      %s140 = ssub.s32 %s8, 1
      %p141 = scmp.lt.s32.totalorder %s17, 1
      %s142 = scalar_select %p141, %s17, 1
      %s143 = smul.addr %s142, 56
      %s144 = smul.addr %s143, 8
      %s145 = scalar_lea.vmem %s0, %s144
      %p146 = pneg %p46
      %p147 = pneg %p43
      %p148 = scmp.lt.s32.totalorder %s18, 0
      %s149 = scalar_select %p148, %s18, 0
      %s150 = smul.addr %s149, 8
      %s151 = scalar_lea.vmem %s1, %s150
      %p152 = pneg %p72
      %p153 = pneg %p69
      %p154 = pneg %p100
      %p155 = pneg %p97
      %p156 = scmp.lt.s32.totalorder %s17, 1
      %s157 = scalar_select %p156, %s17, 1
      %p158 = scmp.lt.s32.totalorder %s18, 0
      %s159 = scalar_select %p158, %s18, 0
      %s160 = smul.addr %s159, 4
      %s161 = smul.addr %s157, 4
      %s162 = sadd.s32 %s160, %s161
      %s163 = smul.addr %s162, 8
      %s164 = scalar_lea.vmem %s2, %s163
      %p165 = scmp.lt.s32.totalorder %s17, 1
      %s166 = scalar_select %p165, %s17, 1
      %s167 = smul.addr %s166, 56
      %s168 = smul.addr %s167, 8
      %s169 = scalar_lea.vmem %s0, %s168
      %p170 = scmp.lt.s32.totalorder %s18, 0
      %s171 = scalar_select %p170, %s18, 0
      %s172 = smul.addr %s171, 8
      %s173 = scalar_lea.vmem %s1, %s172
      %p174 = scmp.lt.s32.totalorder %s17, 1
      %s175 = scalar_select %p174, %s17, 1
      %p176 = scmp.lt.s32.totalorder %s18, 0
      %s177 = scalar_select %p176, %s18, 0
      %s178 = smul.addr %s177, 4
      %s179 = smul.addr %s175, 4
      %s180 = sadd.s32 %s178, %s179
      %s181 = smul.addr %s180, 8
      %s182 = scalar_lea.vmem %s2, %s181
      %v183 = vld [vmem:[%s173] sm:$0xff]
      %v184 = vld [vmem:[%s169] sm:$0xff]
      %v185 = vld [vmem:[%s169 + $0x8] sm:$0xff]
      %v186 = vld [vmem:[%s169 + $0x10] sm:$0xff]
      %v187 = vld [vmem:[%s169 + $0x18] sm:$0xff]
      %v188 = vld [vmem:[%s169 + $0x20] sm:$0xff]
      %v189 = vld [vmem:[%s169 + $0x28] sm:$0xff]
      %v190 = vld [vmem:[%s169 + $0x30] sm:$0xff]
      %v191 = vld [vmem:[%s169 + $0x38] sm:$0xff]
      %v192 = vld [vmem:[%s169 + $0x40] sm:$0xff]
      %v193 = vld [vmem:[%s169 + $0x48] sm:$0xff]
      %v194 = vld [vmem:[%s169 + $0x50] sm:$0xff]
      %v195 = vld [vmem:[%s169 + $0x58] sm:$0xff]
      %v196 = vld [vmem:[%s169 + $0x60] sm:$0xff]
      %v197 = vld [vmem:[%s169 + $0x68] sm:$0xff]
      %v198 = vld [vmem:[%s169 + $0x70] sm:$0xff]
      %v199 = vld [vmem:[%s169 + $0x78] sm:$0xff]
      %v200 = vld [vmem:[%s169 + $0x80] sm:$0xff]
      %v201 = vld [vmem:[%s169 + $0x88] sm:$0xff]
      %v202 = vld [vmem:[%s169 + $0x90] sm:$0xff]
      %v203 = vld [vmem:[%s169 + $0x98] sm:$0xff]
      %v204 = vld [vmem:[%s169 + $0xa0] sm:$0xff]
      %v205 = vld [vmem:[%s169 + $0xa8] sm:$0xff]
      %v206 = vld [vmem:[%s169 + $0xb0] sm:$0xff]
      %v207 = vld [vmem:[%s169 + $0xb8] sm:$0xff]
      %v208 = vld [vmem:[%s169 + $0xc0] sm:$0xff]
      %v209 = vld [vmem:[%s169 + $0xc8] sm:$0xff]
      %v210 = vld [vmem:[%s169 + $0xd0] sm:$0xff]
      %v211 = vld [vmem:[%s169 + $0xd8] sm:$0xff]
      %v212 = vld [vmem:[%s169 + $0xe0] sm:$0xff]
      %v213 = vld [vmem:[%s169 + $0xe8] sm:$0xff]
      %v214 = vld [vmem:[%s169 + $0xf0] sm:$0xff]
      %v215 = vld [vmem:[%s169 + $0xf8] sm:$0xff]
      %v216 = vld [vmem:[%s169 + $0x100] sm:$0xff]
      %v217 = vld [vmem:[%s169 + $0x108] sm:$0xff]
      %v218 = vld [vmem:[%s169 + $0x110] sm:$0xff]
      %v219 = vld [vmem:[%s169 + $0x118] sm:$0xff]
      %v220 = vld [vmem:[%s169 + $0x120] sm:$0xff]
      %v221 = vld [vmem:[%s169 + $0x128] sm:$0xff]
      %v222 = vld [vmem:[%s169 + $0x130] sm:$0xff]
      %v223 = vld [vmem:[%s169 + $0x138] sm:$0xff]
      %v224 = vld [vmem:[%s169 + $0x140] sm:$0xff]
      %v225 = vld [vmem:[%s169 + $0x148] sm:$0xff]
      %v226 = vld [vmem:[%s169 + $0x150] sm:$0xff]
      %v227 = vld [vmem:[%s169 + $0x158] sm:$0xff]
      %v228 = vld [vmem:[%s169 + $0x160] sm:$0xff]
      %v229 = vld [vmem:[%s169 + $0x168] sm:$0xff]
      %v230 = vld [vmem:[%s169 + $0x170] sm:$0xff]
      %v231 = vld [vmem:[%s169 + $0x178] sm:$0xff]
      %v232 = vld [vmem:[%s169 + $0x180] sm:$0xff]
      %v233 = vld [vmem:[%s169 + $0x188] sm:$0xff]
      %v234 = vld [vmem:[%s169 + $0x190] sm:$0xff]
      %v235 = vld [vmem:[%s169 + $0x198] sm:$0xff]
      %v236 = vld [vmem:[%s169 + $0x1a0] sm:$0xf]
      %v237 = vld [vmem:[%s169 + $0x1a8] sm:$0xf]
      %v238 = vld [vmem:[%s169 + $0x1b0] sm:$0xf]
      %v239 = vld [vmem:[%s169 + $0x1b8] sm:$0xf]
      %vm240 = vcmask 883712
      %v242 = vsel %vm240, %v183, 0
      %vm244 = vcmask 1043456
      %v246 = vsel %vm244, %v236, 0
      %v249 = vsel %vm244, %v237, 0
      %v252 = vsel %vm244, %v238, 0
      %v255 = vsel %vm244, %v239, 0
      %257 = vmatprep.subr.mxu0 %v185
      %258 = vmatpush1.msra.mxu0 %v184
      %259 = vmatprep.subr.mxu0 %v189
      %260 = vmatpush1.msra.mxu0 %v188
      %261 = vmatprep.subr.mxu0 %v193
      %262 = vmatpush1.msra.mxu0 %v192
      %263 = vmatprep.subr.mxu0 %v197
      %264 = vmatpush1.msra.mxu0 %v196
      %265 = vmatprep.subr.mxu0 %v201
      %266 = vmatpush1.msra.mxu0 %v200
      %267 = vmatprep.subr.mxu0 %v205
      %268 = vmatpush1.msra.mxu0 %v204
      %269 = vmatprep.subr.mxu0 %v209
      %270 = vmatpush1.msra.mxu0 %v208
      %271 = vmatprep.subr.mxu0 %v213
      %272 = vmatpush1.msra.mxu0 %v212
      %273 = vmatprep.subr.mxu0 %v217
      %274 = vmatpush1.msra.mxu0 %v216
      %275 = vmatprep.subr.mxu0 %v221
      %276 = vmatpush1.msra.mxu0 %v220
      %277 = vmatprep.subr.mxu0 %v225
      %278 = vmatpush1.msra.mxu0 %v224
      %279 = vmatprep.subr.mxu0 %v229
      %280 = vmatpush1.msra.mxu0 %v228
      %281 = vmatprep.subr.mxu0 %v233
      %282 = vmatpush1.msra.mxu0 %v232
      %283 = vmatprep.subr.mxu0 %v249
      %284 = vmatpush1.msra.mxu0 %v246
      %285 = vmatprep.subr.mxu0 0.0
      %286 = vmatpush1.msra.mxu0 0.0
      %287 = vmatprep.subr.mxu0 0.0
      %288 = vmatpush1.msra.mxu0 0.0
      %289 = vmatprep.subr.mxu0 0.0
      %290 = vmatpush1.msra.mxu0 0.0
      %291 = vmatprep.subr.mxu0 0.0
      %292 = vmatpush1.msra.mxu0 0.0
      %293 = vmatprep.subr.mxu0 0.0
      %294 = vmatpush1.msra.mxu0 0.0
      %295 = vmatprep.subr.mxu0 0.0
      %296 = vmatpush1.msra.mxu0 0.0
      %297 = vmatprep.subr.mxu0 0.0
      %298 = vmatpush1.msra.mxu0 0.0
      %299 = vmatprep.subr.mxu0 0.0
      %300 = vmatpush1.msra.mxu0 0.0
      %301 = vmatprep.subr.mxu0 0.0
      %302 = vmatpush1.msra.mxu0 0.0
      %303 = vmatprep.subr.mxu0 0.0
      %304 = vmatpush1.msra.mxu0 0.0
      %305 = vmatprep.subr.mxu0 0.0
      %306 = vmatpush1.msra.mxu0 0.0
      %307 = vmatprep.subr.mxu0 0.0
      %308 = vmatpush1.msra.mxu0 0.0
      %309 = vmatprep.subr.mxu0 0.0
      %310 = vmatpush1.msra.mxu0 0.0
      %311 = vmatprep.subr.mxu0 0.0
      %312 = vmatpush1.msra.mxu0 0.0
      %313 = vmatprep.subr.mxu0 0.0
      %314 = vmatpush1.msra.mxu0 0.0
      %315 = vmatprep.subr.mxu0 0.0
      %316 = vmatpush1.msra.mxu0 0.0
      %317 = vmatprep.subr.mxu0 0.0
      %318 = vmatpush1.msra.mxu0 0.0
      %319 = vmatprep.subr.mxu0 0.0
      %320 = vmatpush1.msra.mxu0 0.0
      %321 = vmatprep.mubr.f32.mxu0 0.0
      %322 = vmatmul.mubr.f32.gmra.mrb[0].mxu0 %v242
      %v323 = vpop.f32.mrb[0].mxu0
      %v324 = vadd.f32 0.0, %v323
      %v325 = vpop.f32.mrb[0].mxu0
      %v326 = vadd.f32 0.0, %v325
      %327 = vdwg.mxu0
      %328 = vmatprep.subr.mxu0 %v187
      %329 = vmatpush1.msra.mxu0 %v186
      %330 = vmatprep.subr.mxu0 %v191
      %331 = vmatpush1.msra.mxu0 %v190
      %332 = vmatprep.subr.mxu0 %v195
      %333 = vmatpush1.msra.mxu0 %v194
      %334 = vmatprep.subr.mxu0 %v199
      %335 = vmatpush1.msra.mxu0 %v198
      %336 = vmatprep.subr.mxu0 %v203
      %337 = vmatpush1.msra.mxu0 %v202
      %338 = vmatprep.subr.mxu0 %v207
      %339 = vmatpush1.msra.mxu0 %v206
      %340 = vmatprep.subr.mxu0 %v211
      %341 = vmatpush1.msra.mxu0 %v210
      %342 = vmatprep.subr.mxu0 %v215
      %343 = vmatpush1.msra.mxu0 %v214
      %344 = vmatprep.subr.mxu0 %v219
      %345 = vmatpush1.msra.mxu0 %v218
      %346 = vmatprep.subr.mxu0 %v223
      %347 = vmatpush1.msra.mxu0 %v222
      %348 = vmatprep.subr.mxu0 %v227
      %349 = vmatpush1.msra.mxu0 %v226
      %350 = vmatprep.subr.mxu0 %v231
      %351 = vmatpush1.msra.mxu0 %v230
      %352 = vmatprep.subr.mxu0 %v235
      %353 = vmatpush1.msra.mxu0 %v234
      %354 = vmatprep.subr.mxu0 %v255
      %355 = vmatpush1.msra.mxu0 %v252
      %356 = vmatprep.subr.mxu0 0.0
      %357 = vmatpush1.msra.mxu0 0.0
      %358 = vmatprep.subr.mxu0 0.0
      %359 = vmatpush1.msra.mxu0 0.0
      %360 = vmatprep.subr.mxu0 0.0
      %361 = vmatpush1.msra.mxu0 0.0
      %362 = vmatprep.subr.mxu0 0.0
      %363 = vmatpush1.msra.mxu0 0.0
      %364 = vmatprep.subr.mxu0 0.0
      %365 = vmatpush1.msra.mxu0 0.0
      %366 = vmatprep.subr.mxu0 0.0
      %367 = vmatpush1.msra.mxu0 0.0
      %368 = vmatprep.subr.mxu0 0.0
      %369 = vmatpush1.msra.mxu0 0.0
      %370 = vmatprep.subr.mxu0 0.0
      %371 = vmatpush1.msra.mxu0 0.0
      %372 = vmatprep.subr.mxu0 0.0
      %373 = vmatpush1.msra.mxu0 0.0
      %374 = vmatprep.subr.mxu0 0.0
      %375 = vmatpush1.msra.mxu0 0.0
      %376 = vmatprep.subr.mxu0 0.0
      %377 = vmatpush1.msra.mxu0 0.0
      %378 = vmatprep.subr.mxu0 0.0
      %379 = vmatpush1.msra.mxu0 0.0
      %380 = vmatprep.subr.mxu0 0.0
      %381 = vmatpush1.msra.mxu0 0.0
      %382 = vmatprep.subr.mxu0 0.0
      %383 = vmatpush1.msra.mxu0 0.0
      %384 = vmatprep.subr.mxu0 0.0
      %385 = vmatpush1.msra.mxu0 0.0
      %386 = vmatprep.subr.mxu0 0.0
      %387 = vmatpush1.msra.mxu0 0.0
      %388 = vmatprep.subr.mxu0 0.0
      %389 = vmatpush1.msra.mxu0 0.0
      %390 = vmatprep.subr.mxu0 0.0
      %391 = vmatpush1.msra.mxu0 0.0
      %392 = vmatprep.mubr.f32.mxu0 0.0
      %393 = vmatmul.mubr.f32.gmra.mrb[0].mxu0 %v242
      %v394 = vpop.f32.mrb[0].mxu0
      %v395 = vadd.f32 0.0, %v394
      %v396 = vpop.f32.mrb[0].mxu0
      %v397 = vadd.f32 0.0, %v396
      %398 = vdwg.mxu0
      %399 = vst [vmem:[#allocation2] sm:$0xff] %v324
      %400 = vst [vmem:[#allocation2 + $0x8] sm:$0xff] %v326
      %401 = vst [vmem:[#allocation2 + $0x10] sm:$0xff] %v395
      %402 = vst [vmem:[#allocation2 + $0x18] sm:$0xff] %v397
      %v403 = vld [vmem:[#allocation2] sm:$0xff]
      %v404 = vld [vmem:[#allocation2 + $0x8] sm:$0xff]
      %v405 = vld [vmem:[#allocation2 + $0x10] sm:$0xff]
      %v406 = vld [vmem:[#allocation2 + $0x18] sm:$0xff]
      %v407 = vadd.f32 %v403, %v404
      %v408 = vadd.f32 %v407, %v405
      %v409 = vadd.f32 %v408, %v406
      %410 = vadd.xlane.f32.xlu0 %v409
      %v411 = vpop.xlane.xlu0 %410
      %v412 = vrcp.pop 512.0
      %v413 = vmul.f32 %v411, %v412
      %v414 = vsub.f32 %v403, %v413
      %v415 = vsub.f32 %v404, %v413
      %v416 = vsub.f32 %v405, %v413
      %v417 = vsub.f32 %v406, %v413
      %v418 = vmul.f32 %v414, %v414
      %v419 = vmul.f32 %v415, %v415
      %v420 = vmul.f32 %v416, %v416
      %v421 = vmul.f32 %v417, %v417
      %v422 = vadd.f32 %v418, %v419
      %v423 = vadd.f32 %v422, %v420
      %v424 = vadd.f32 %v423, %v421
      %425 = vadd.xlane.f32.xlu0 %v424
      %v426 = vpop.xlane.xlu0 %425
      %v427 = vmul.f32 %v426, %v412
      %v428 = vadd.f32 %v427, 1e-05
      %v429 = vrsqrt.pop %v428
      %v430 = vmul.f32 %v414, %v429
      %v431 = vmul.f32 %v415, %v429
      %v432 = vmul.f32 %v416, %v429
      %v433 = vmul.f32 %v417, %v429
      %vm434 = vcmp.ge.f32.partialorder %v430, 0.0
      %vm435 = vcmp.ge.f32.partialorder %v431, 0.0
      %vm436 = vcmp.ge.f32.partialorder %v432, 0.0
      %vm437 = vcmp.ge.f32.partialorder %v433, 0.0
      %v438 = vmul.f32 %v430, 0.01
      %v439 = vmul.f32 %v431, 0.01
      %v440 = vmul.f32 %v432, 0.01
      %v441 = vmul.f32 %v433, 0.01
      %v442 = vsel %vm434, %v430, %v438
      %v443 = vsel %vm435, %v431, %v439
      %v444 = vsel %vm436, %v432, %v440
      %v445 = vsel %vm437, %v433, %v441
      %446 = vst [vmem:[%s182] sm:$0xff] %v442
      %447 = vst [vmem:[%s182 + $0x8] sm:$0xff] %v443
      %448 = vst [vmem:[%s182 + $0x10] sm:$0xff] %v444
      %449 = vst [vmem:[%s182 + $0x18] sm:$0xff] %v445
      %p450 = scmp.lt.s32.totalorder %s17, 1
      %s451 = scalar_select %p450, %s17, 1
      %p452 = scmp.lt.s32.totalorder %s18, 0
      %s453 = scalar_select %p452, %s18, 0
      %s454 = smul.addr %s453, 4
      %s455 = smul.addr %s451, 4
      %s456 = sadd.s32 %s454, %s455
      %s457 = smul.addr %s456, 8
      %s458 = scalar_lea.vmem %s2, %s457
      // Predicated region
      $region29: #{conv3d_bn_relu.1} parent=27 // pred_check
        %p459 = pneg %p97
      $region30: #{conv3d_bn_relu.1} parent=27 // pred_check_branch
        %461 = sbr.rel (%p459) target = $region32
      $region31: #{conv3d_bn_relu.1} parent=27 // pred_region
        _
      $region32: #{conv3d_bn_relu.1} parent=27 // pred_fallthru
        _
    $region28: #{conv3d_bn_relu.1} parent=5 // pred_fallthru
      _
    %p462 = scmp.le.s32.totalorder 2, %s8
    // Predicated region
    $region33: #{conv3d_bn_relu.1} parent=5 // pred_check
      %p463 = pneg %p462
    $region34: #{conv3d_bn_relu.1} parent=5 // pred_check_branch
      %465 = sbr.rel (%p463) target = $region36
    $region35: #{conv3d_bn_relu.1} parent=5 // pred_region
      %s466 = ssub.s32 %s8, 2
      // Predicated region
      $region37: #{conv3d_bn_relu.1} parent=35 // pred_check
        %p467 = pneg %p103
      $region38: #{conv3d_bn_relu.1} parent=35 // pred_check_branch
        %469 = sbr.rel (%p467) target = $region40
      $region39: #{conv3d_bn_relu.1} parent=35 // pred_region
        %p470 = scmp.lt.s32.totalorder %s19, 1
        %s471 = scalar_select %p470, %s19, 1
        %p472 = scmp.lt.s32.totalorder %s20, 0
        %s473 = scalar_select %p472, %s20, 0
        %s474 = smul.addr %s473, 4
        %s475 = smul.addr %s471, 4
        %s476 = sadd.s32 %s474, %s475
        %s477 = smul.addr %s476, 8
        %s478 = scalar_lea.vmem %s2, %s477
      $region40: #{conv3d_bn_relu.1} parent=35 // pred_fallthru
        _
    $region36: #{conv3d_bn_relu.1} parent=5 // pred_fallthru
      _
  $region6: #{conv3d_bn_relu.1} parent=0 // loop_footer
    %s12 = sadd.s32 1, %s8
  $region7: #{conv3d_bn_relu.1} parent=0 // loop_footer_branch
    %7 = sbr.rel target = $region3
  $region8: #{conv3d_bn_relu.1} parent=0 // loop_exit
    _

</llo_original>
